<compile_context>
chip_gen: v6e
topology: v6e:2x2x1
jax: 0.10.0
libtpu: 0.0.40
codegen_flags: <defaults>
</compile_context>

<pallas_src>
import numpy as np
import jax
import jax.numpy as jnp
from jax.experimental import pallas as pl
from jax.experimental.pallas import tpu as pltpu

# Constants from the original (fastai-style) repo (matcher, bbox_2_activ,
# FOCAL_LOSS_*, SMOOTH_L1_LOSS_BETA):
FOCAL_LOSS_ALPHA = 0.25
FOCAL_LOSS_GAMMA = 2.0          # kernel assumes gamma == 2 (uses w*w)
SMOOTH_L1_LOSS_BETA = 1.0 / 9.0
MATCH_THR = 0.5                 # matcher: IoU > 0.5 -> positive
BACK_THR = 0.4                  # matcher: IoU < 0.4 -> background, else ignore
BBOX_REG_SCALE = (0.1, 0.1, 0.2, 0.2)  # bbox_2_activ divides by these


def _retinanet_loss_kernel(anc_ref, cls_ref, box_ref, gt_ref,
                           bb_ref, cl_ref, np_ref):
    # Zero the per-image accumulators on the first anchor chunk.
    @pl.when(pl.program_id(1) == 0)
    def _init():
        bb_ref[...] = jnp.zeros_like(bb_ref)
        cl_ref[...] = jnp.zeros_like(cl_ref)
        np_ref[...] = jnp.zeros_like(np_ref)

    anc = anc_ref[0]        # (4, TN)  anchors, cthw, channel-first
    x_cls = cls_ref[0]      # (C, TN)  class logits, channel-first
    box_pred = box_ref[0]   # (4, TN)  box regression activations
    gt = gt_ref[0]          # (M, 5)   GT: cols [cx, cy, w, h, label]

    TN = anc.shape[1]
    M = gt.shape[0]
    C = x_cls.shape[0]

    a_cx = anc[0:1, :]; a_cy = anc[1:2, :]
    a_w = anc[2:3, :];  a_h = anc[3:4, :]             # (1, TN) lane-dense rows
    g_cx = gt[:, 0:1];  g_cy = gt[:, 1:2]
    g_w = gt[:, 2:3];   g_h = gt[:, 3:4]              # (M, 1) columns
    g_lab = gt[:, 4:5]                                # (M, 1)

    # ---- matcher: pairwise IoU (M, TN), max + first-argmax over the GT axis
    a_x1 = a_cx - 0.5 * a_w; a_x2 = a_cx + 0.5 * a_w
    a_y1 = a_cy - 0.5 * a_h; a_y2 = a_cy + 0.5 * a_h
    g_x1 = g_cx - 0.5 * g_w; g_x2 = g_cx + 0.5 * g_w
    g_y1 = g_cy - 0.5 * g_h; g_y2 = g_cy + 0.5 * g_h

    iw = jnp.maximum(jnp.minimum(a_x2, g_x2) - jnp.maximum(a_x1, g_x1), 0.0)
    ih = jnp.maximum(jnp.minimum(a_y2, g_y2) - jnp.maximum(a_y1, g_y1), 0.0)
    inter = iw * ih                                    # (M, TN)
    union = a_w * a_h + g_w * g_h - inter
    iou = inter / (union + 1e-8)                       # (M, TN)

    vals = jnp.max(iou, axis=0, keepdims=True)         # (1, TN) sublane reduce
    row_ids = jax.lax.broadcasted_iota(jnp.int32, (M, TN), 0)
    # first GT index achieving the max (mimics torch.max tie-breaking)
    idxs = jnp.min(jnp.where(iou == vals, row_ids, M), axis=0, keepdims=True)

    matches = jnp.where(vals > MATCH_THR, idxs,
                        jnp.where(vals < BACK_THR, -1, -2))   # (1, TN) int32
    pos = matches >= 0                                 # (1, TN)
    pos_f = pos.astype(jnp.float32)
    keep_f = (matches >= -1).astype(jnp.float32)       # non-ignored anchors

    # ---- gather matched GT attributes: one-hot (M, TN) + 8-row sublane sums.
    # (Kept on the VPU instead of an MXU matmul to guarantee exact f32 gather
    #  of the GT coordinates; with M on sublanes this is cheap.)
    onehot = jnp.where((row_ids == matches) & pos, 1.0, 0.0)   # (M, TN)
    tb_cx = jnp.sum(onehot * g_cx, axis=0, keepdims=True)      # (1, TN)
    tb_cy = jnp.sum(onehot * g_cy, axis=0, keepdims=True)
    tb_w = jnp.sum(onehot * g_w, axis=0, keepdims=True)
    tb_h = jnp.sum(onehot * g_h, axis=0, keepdims=True)
    glab = jnp.sum(onehot * g_lab, axis=0, keepdims=True)      # 0 if not positive

    # ---- bbox_2_activ + smooth-L1 over positive anchors --------------------
    sx, sy, sw, sh = BBOX_REG_SCALE
    inv_aw = 1.0 / a_w                                 # hoisted, reused twice
    inv_ah = 1.0 / a_h
    t_cx = (tb_cx - a_cx) * inv_aw * (1.0 / sx)
    t_cy = (tb_cy - a_cy) * inv_ah * (1.0 / sy)
    t_w = jnp.log(tb_w * inv_aw + 1e-8) * (1.0 / sw)
    t_h = jnp.log(tb_h * inv_ah + 1e-8) * (1.0 / sh)

    beta = SMOOTH_L1_LOSS_BETA

    def smooth_l1(p, t):
        n = jnp.abs(p - t)
        return jnp.where(n < beta, (0.5 / beta) * n * n, n - 0.5 * beta)

    bb_elem = (smooth_l1(box_pred[0:1, :], t_cx) +
               smooth_l1(box_pred[1:2, :], t_cy) +
               smooth_l1(box_pred[2:3, :], t_w) +
               smooth_l1(box_pred[3:4, :], t_h)) * pos_f        # (1, TN)

    # ---- focal / BCE-with-logits on non-ignored anchors, (C, TN) -----------
    x = x_cls + 1.0                                    # calc_loss: clas_pred + 1
    cls_iota = jax.lax.broadcasted_iota(jnp.int32, (C, TN), 0).astype(jnp.float32)
    tgt = jnp.where(cls_iota == (glab - 1.0), 1.0, 0.0)    # one_hot(n_c+1)[:, 1:]

    # One exp per element, reused by the (detached) sigmoid and the stable
    # BCE log-term (saves one EUP exp per element vs. the naive form).
    # TODO(synk): pl.reciprocal(approx=True) would push the divide onto the
    # EUP, but its approximation error is hard to bound against the test
    # tolerance, so an exact divide is used.
    e = jnp.exp(-jnp.abs(x))
    one_p_e = 1.0 + e
    inv = 1.0 / one_p_e
    ps = jnp.where(x >= 0.0, inv, e * inv)             # sigmoid(x), stable
    w = tgt * (1.0 - ps) + (1.0 - tgt) * ps
    alphas = (1.0 - tgt) * FOCAL_LOSS_ALPHA + tgt * (1.0 - FOCAL_LOSS_ALPHA)
    w = w * w * alphas                                 # gamma == 2.0
    bce = jnp.maximum(x, 0.0) - x * tgt + jnp.log(one_p_e)
    cls_elem = w * bce * keep_f                        # (C, TN), ignored masked

    # ---- accumulate per-image (unnormalised) partial sums ------------------
    bb_ref[0] = bb_ref[0] + jnp.sum(bb_elem, axis=(0, 1), keepdims=True)
    cl_ref[0] = cl_ref[0] + jnp.sum(cls_elem, axis=(0, 1), keepdims=True)
    np_ref[0] = np_ref[0] + jnp.sum(pos_f, axis=(0, 1), keepdims=True)


def _pick_tile_n(n, max_tile=4096):
    """Largest anchor-chunk <= max_tile that divides N (multiple of 128)."""
    if n <= max_tile:
        return n
    t = (max_tile // 128) * 128
    while t >= 128:
        if n % t == 0:
            return t
        t -= 128
    # TODO(synk): pad N to a multiple of 128 and mask padded anchors.
    return n


def retinanet_losses(anchors, cls_preds, bbox_preds, gt_boxes, gt_labels,
                     *, tile_n=None):
    """anchors (B,N,4) cthw, cls_preds (B,N,C), bbox_preds (B,N,4),
       gt_boxes (B,M,4) cthw, gt_labels (B,M) int in [1..C]."""
    B, N, C = cls_preds.shape
    M = gt_boxes.shape[1]

    if tile_n is None:
        tile_n = _pick_tile_n(N)
    if N % tile_n != 0:
        raise ValueError(f"tile_n={tile_n} must divide N={N}")
    n_chunks = N // tile_n

    # Lane-dense (channel-first) layouts: anchor axis on lanes, features on
    # sublanes.  (Layout plumbing only; in a real model the heads would emit
    # channel-first directly.)
    anc_t = jnp.transpose(anchors, (0, 2, 1)).astype(jnp.float32)     # (B, 4, N)
    cls_t = jnp.transpose(cls_preds, (0, 2, 1)).astype(jnp.float32)   # (B, C, N)
    box_t = jnp.transpose(bbox_preds, (0, 2, 1)).astype(jnp.float32)  # (B, 4, N)
    # single merged GT input: cols [cx, cy, w, h, label]
    gt = jnp.concatenate(
        [gt_boxes.astype(jnp.float32),
         gt_labels.astype(jnp.float32)[:, :, None]], axis=-1)         # (B, M, 5)

    # TODO(synk): variable per-image GT count (empty-target early exit of the
    # original) would need a scalar-prefetched gt-count + sublane masking.

    # Explicit VMEM budget: double-buffered input tiles + elementwise temps.
    est = (2 * 4 * tile_n * (4 + 4 + C) + 2 * 4 * M * 5
           + 16 * 4 * tile_n * (M + C + 2) + (4 << 20))
    vmem_limit = int(min(100 << 20, max(32 << 20, est)))

    bb, cl, npos = pl.pallas_call(
        _retinanet_loss_kernel,
        out_shape=(jax.ShapeDtypeStruct((B, 1, 1), jnp.float32),
                   jax.ShapeDtypeStruct((B, 1, 1), jnp.float32),
                   jax.ShapeDtypeStruct((B, 1, 1), jnp.float32)),
        grid_spec=pltpu.PrefetchScalarGridSpec(
            num_scalar_prefetch=0,
            grid=(B, n_chunks),
            in_specs=[
                pl.BlockSpec((1, 4, tile_n), lambda b, n: (b, 0, n)),  # anchors
                pl.BlockSpec((1, C, tile_n), lambda b, n: (b, 0, n)),  # logits
                pl.BlockSpec((1, 4, tile_n), lambda b, n: (b, 0, n)),  # box preds
                pl.BlockSpec((1, M, 5), lambda b, n: (b, 0, 0)),       # GT+labels
            ],
            out_specs=[
                pl.BlockSpec((1, 1, 1), lambda b, n: (b, 0, 0)),
                pl.BlockSpec((1, 1, 1), lambda b, n: (b, 0, 0)),
                pl.BlockSpec((1, 1, 1), lambda b, n: (b, 0, 0)),
            ],
        ),
        compiler_params=pltpu.CompilerParams(
            dimension_semantics=("parallel", "arbitrary"),
            vmem_limit_bytes=vmem_limit,
        ),
    )(anc_t, cls_t, box_t, gt)

    # clamp(num_pos, 1) normalisation + batch mean in plain JAX.
    denom = jnp.maximum(npos[:, 0, 0], 1.0)
    return {
        "classification_loss": jnp.mean(cl[:, 0, 0] / denom),
        "regression_loss": jnp.mean(bb[:, 0, 0] / denom),
    }


def _numpy_reference(anchors, cls_preds, bbox_preds, gt_boxes, gt_labels, n_c):
    """Mirrors the PyTorch forward (boolean indexing version) in NumPy."""
    anchors = np.asarray(anchors, np.float32)
    cls_preds = np.asarray(cls_preds, np.float32)
    bbox_preds = np.asarray(bbox_preds, np.float32)
    gt_boxes = np.asarray(gt_boxes, np.float32)
    gt_labels = np.asarray(gt_labels, np.int64)
    B = anchors.shape[0]
    reg_l, cls_l = [], []

    def cthw2tlbr(x):
        return np.concatenate([x[:, :2] - x[:, 2:] * 0.5,
                               x[:, :2] + x[:, 2:] * 0.5], axis=1)

    for b in range(B):
        anc, cp, bp = anchors[b], cls_preds[b], bbox_preds[b]
        gt, lab = gt_boxes[b], gt_labels[b]
        a, g = cthw2tlbr(anc), cthw2tlbr(gt)
        iw = np.maximum(np.minimum(a[:, None, 2], g[None, :, 2]) -
                        np.maximum(a[:, None, 0], g[None, :, 0]), 0.0)
        ih = np.maximum(np.minimum(a[:, None, 3], g[None, :, 3]) -
                        np.maximum(a[:, None, 1], g[None, :, 1]), 0.0)
        inter = iw * ih
        union = (anc[:, 2] * anc[:, 3])[:, None] + (gt[:, 2] * gt[:, 3])[None, :] - inter
        iou = inter / (union + np.float32(1e-8))
        vals, idxs = iou.max(1), iou.argmax(1)
        matches = np.full(anc.shape[0], -2, dtype=np.int64)
        matches[vals < BACK_THR] = -1
        matches[vals > MATCH_THR] = idxs[vals > MATCH_THR]
        bbox_mask = matches >= 0
        npos = int(bbox_mask.sum())
        if npos != 0:
            bpred = bp[bbox_mask]
            btgt = gt[matches[bbox_mask]]
            am = anc[bbox_mask]
            t_centers = (btgt[:, :2] - am[:, :2]) / am[:, 2:]
            t_sizes = np.log(btgt[:, 2:] / am[:, 2:] + 1e-8)
            btgt_act = np.concatenate([t_centers, t_sizes], 1) / np.array([BBOX_REG_SCALE])
            n = np.abs(bpred - btgt_act)
            bb_loss = np.where(n < SMOOTH_L1_LOSS_BETA,
                               0.5 * n * n / SMOOTH_L1_LOSS_BETA,
                               n - 0.5 * SMOOTH_L1_LOSS_BETA).sum()
        else:
            bb_loss = 0.0
        m1 = matches + 1
        clas_mask = m1 >= 0
        cpred = cp[clas_mask].astype(np.float64) + 1.0
        lab_cat = np.concatenate([[0], lab])
        ctgt = lab_cat[m1[clas_mask]]
        t = np.eye(n_c + 1)[ctgt][:, 1:]
        ps = 1.0 / (1.0 + np.exp(-cpred))
        w = t * (1 - ps) + (1 - t) * ps
        al = (1 - t) * FOCAL_LOSS_ALPHA + t * (1 - FOCAL_LOSS_ALPHA)
        w = (w ** FOCAL_LOSS_GAMMA) * al
        bce = np.maximum(cpred, 0) - cpred * t + np.log1p(np.exp(-np.abs(cpred)))
        clas_loss = (w * bce).sum()
        denom = max(float(npos), 1.0)
        reg_l.append(bb_loss / denom)
        cls_l.append(clas_loss / denom)
    return sum(reg_l) / B, sum(cls_l) / B


if __name__ == "__main__":
    B, N, C, M = 2, 256, 4, 8   # batch, anchors/img, num_classes, GT boxes/img
    key = jax.random.PRNGKey(0)
    ks = jax.random.split(key, 7)

    gt_cxcy = jax.random.uniform(ks[0], (B, M, 2), minval=0.25, maxval=0.75)
    gt_wh = jax.random.uniform(ks[1], (B, M, 2), minval=0.10, maxval=0.30)
    gt_boxes = jnp.concatenate([gt_cxcy, gt_wh], -1).astype(jnp.float32)
    gt_labels = jax.random.randint(ks[2], (B, M), 1, C + 1)        # labels in [1..C]

    anc_cxcy = jax.random.uniform(ks[3], (B, N, 2), minval=0.0, maxval=1.0)
    anc_wh = jax.random.uniform(ks[4], (B, N, 2), minval=0.05, maxval=0.35)
    anchors = jnp.concatenate([anc_cxcy, anc_wh], -1).astype(jnp.float32)
    # make the first M anchors near-copies of the GT so positives exist
    anchors = anchors.at[:, :M, :].set(
        gt_boxes + 0.01 * jax.random.normal(ks[5], (B, M, 4)))

    cls_preds = jax.random.normal(ks[6], (B, N, C), dtype=jnp.float32)
    bbox_preds = jax.random.normal(jax.random.PRNGKey(1), (B, N, 4), dtype=jnp.float32)

    # tile_n=128 -> 2 anchor chunks per image, exercising the accumulation path
    out = retinanet_losses(anchors, cls_preds, bbox_preds, gt_boxes, gt_labels,
                           tile_n=128)
    out = jax.block_until_ready(out)

    ref_reg, ref_cls = _numpy_reference(anchors, cls_preds, bbox_preds,
                                        gt_boxes, gt_labels, C)
    np.testing.assert_allclose(float(out["regression_loss"]), ref_reg,
                               rtol=2e-3, atol=2e-3)
    np.testing.assert_allclose(float(out["classification_loss"]), ref_cls,
                               rtol=2e-3, atol=2e-3)
    print("KERNEL_OK")
</pallas_src>

<mosaic_0001>
module attributes {stable_mosaic.version = 11 : i64} {
  func.func @_retinanet_loss_kernel(%arg0: i32, %arg1: i32, %arg2: memref<1x4x128xf32, #tpu.memory_space<vmem>>, %arg3: memref<1x4x128xf32, #tpu.memory_space<vmem>>, %arg4: memref<1x4x128xf32, #tpu.memory_space<vmem>>, %arg5: memref<1x8x5xf32, #tpu.memory_space<vmem>>, %arg6: memref<1x1x1xf32, #tpu.memory_space<vmem>>, %arg7: memref<1x1x1xf32, #tpu.memory_space<vmem>>, %arg8: memref<1x1x1xf32, #tpu.memory_space<vmem>>) attributes {dimension_semantics = [#tpu.dimension_semantics<parallel>, #tpu.dimension_semantics<arbitrary>], iteration_bounds = array<i64: 2, 2>, scalar_prefetch = 0 : i64, scratch_operands = 0 : i64, tpu.core_type = #tpu.core_type<tc>, window_params = [{transform_indices = @transform_0, window_bounds = array<i64: 1, 4, 128>}, {transform_indices = @transform_1, window_bounds = array<i64: 1, 4, 128>}, {transform_indices = @transform_2, window_bounds = array<i64: 1, 4, 128>}, {transform_indices = @transform_3, window_bounds = array<i64: 1, 8, 5>}, {transform_indices = @transform_4, window_bounds = array<i64: 1, 1, 1>}, {transform_indices = @transform_5, window_bounds = array<i64: 1, 1, 1>}, {transform_indices = @transform_6, window_bounds = array<i64: 1, 1, 1>}]} {
    %c0_i32 = arith.constant 0 : i32
    %0 = arith.cmpi eq, %arg1, %c0_i32 : i32
    %1 = arith.extui %0 : i1 to i32
    %c0_i32_0 = arith.constant 0 : i32
    %2 = arith.cmpi ne, %1, %c0_i32_0 : i32
    scf.if %2 {
      %cst_90 = arith.constant 0.000000e+00 : f32
      %277 = vector.broadcast %cst_90 : f32 to vector<1x1x1xf32>
      %c0_91 = arith.constant 0 : index
      %c0_92 = arith.constant 0 : index
      %c0_93 = arith.constant 0 : index
      %278 = vector.load %arg6[%c0_91, %c0_92, %c0_93] : memref<1x1x1xf32, #tpu.memory_space<vmem>>, vector<1x1x1xf32>
      tpu.vector_store %arg6[%c0_91, %c0_92, %c0_93], %277 {strides = array<i32>} : memref<1x1x1xf32, #tpu.memory_space<vmem>>, vector<1x1x1xf32>,
      %cst_94 = arith.constant 0.000000e+00 : f32
      %279 = vector.broadcast %cst_94 : f32 to vector<1x1x1xf32>
      %c0_95 = arith.constant 0 : index
      %c0_96 = arith.constant 0 : index
      %c0_97 = arith.constant 0 : index
      %280 = vector.load %arg7[%c0_95, %c0_96, %c0_97] : memref<1x1x1xf32, #tpu.memory_space<vmem>>, vector<1x1x1xf32>
      tpu.vector_store %arg7[%c0_95, %c0_96, %c0_97], %279 {strides = array<i32>} : memref<1x1x1xf32, #tpu.memory_space<vmem>>, vector<1x1x1xf32>,
      %cst_98 = arith.constant 0.000000e+00 : f32
      %281 = vector.broadcast %cst_98 : f32 to vector<1x1x1xf32>
      %c0_99 = arith.constant 0 : index
      %c0_100 = arith.constant 0 : index
      %c0_101 = arith.constant 0 : index
      %282 = vector.load %arg8[%c0_99, %c0_100, %c0_101] : memref<1x1x1xf32, #tpu.memory_space<vmem>>, vector<1x1x1xf32>
      tpu.vector_store %arg8[%c0_99, %c0_100, %c0_101], %281 {strides = array<i32>} : memref<1x1x1xf32, #tpu.memory_space<vmem>>, vector<1x1x1xf32>,
    } else {
    }
    %c0 = arith.constant 0 : index
    %c0_1 = arith.constant 0 : index
    %c0_2 = arith.constant 0 : index
    %3 = vector.load %arg2[%c0, %c0_1, %c0_2] : memref<1x4x128xf32, #tpu.memory_space<vmem>>, vector<1x4x128xf32>
    %4 = vector.shape_cast %3 : vector<1x4x128xf32> to vector<4x128xf32>
    %c0_3 = arith.constant 0 : index
    %c0_4 = arith.constant 0 : index
    %c0_5 = arith.constant 0 : index
    %5 = vector.load %arg3[%c0_3, %c0_4, %c0_5] : memref<1x4x128xf32, #tpu.memory_space<vmem>>, vector<1x4x128xf32>
    %6 = vector.shape_cast %5 : vector<1x4x128xf32> to vector<4x128xf32>
    %c0_6 = arith.constant 0 : index
    %c0_7 = arith.constant 0 : index
    %c0_8 = arith.constant 0 : index
    %7 = vector.load %arg4[%c0_6, %c0_7, %c0_8] : memref<1x4x128xf32, #tpu.memory_space<vmem>>, vector<1x4x128xf32>
    %8 = vector.shape_cast %7 : vector<1x4x128xf32> to vector<4x128xf32>
    %c0_9 = arith.constant 0 : index
    %c0_10 = arith.constant 0 : index
    %c0_11 = arith.constant 0 : index
    %9 = vector.load %arg5[%c0_9, %c0_10, %c0_11] : memref<1x8x5xf32, #tpu.memory_space<vmem>>, vector<1x8x5xf32>
    %10 = vector.shape_cast %9 : vector<1x8x5xf32> to vector<8x5xf32>
    %11 = vector.extract_strided_slice %4 {offsets = [0, 0], sizes = [1, 128], strides = [1, 1]} : vector<4x128xf32> to vector<1x128xf32>
    %12 = vector.extract_strided_slice %4 {offsets = [1, 0], sizes = [1, 128], strides = [1, 1]} : vector<4x128xf32> to vector<1x128xf32>
    %13 = vector.extract_strided_slice %4 {offsets = [2, 0], sizes = [1, 128], strides = [1, 1]} : vector<4x128xf32> to vector<1x128xf32>
    %14 = vector.extract_strided_slice %4 {offsets = [3, 0], sizes = [1, 128], strides = [1, 1]} : vector<4x128xf32> to vector<1x128xf32>
    %15 = vector.extract_strided_slice %10 {offsets = [0, 0], sizes = [8, 1], strides = [1, 1]} : vector<8x5xf32> to vector<8x1xf32>
    %16 = vector.extract_strided_slice %10 {offsets = [0, 1], sizes = [8, 1], strides = [1, 1]} : vector<8x5xf32> to vector<8x1xf32>
    %17 = vector.extract_strided_slice %10 {offsets = [0, 2], sizes = [8, 1], strides = [1, 1]} : vector<8x5xf32> to vector<8x1xf32>
    %18 = vector.extract_strided_slice %10 {offsets = [0, 3], sizes = [8, 1], strides = [1, 1]} : vector<8x5xf32> to vector<8x1xf32>
    %19 = vector.extract_strided_slice %10 {offsets = [0, 4], sizes = [8, 1], strides = [1, 1]} : vector<8x5xf32> to vector<8x1xf32>
    %cst = arith.constant 5.000000e-01 : f32
    %20 = vector.broadcast %cst : f32 to vector<1x128xf32>
    %21 = arith.mulf %20, %13 : vector<1x128xf32>
    %22 = arith.subf %11, %21 : vector<1x128xf32>
    %cst_12 = arith.constant 5.000000e-01 : f32
    %23 = vector.broadcast %cst_12 : f32 to vector<1x128xf32>
    %24 = arith.mulf %23, %13 : vector<1x128xf32>
    %25 = arith.addf %11, %24 : vector<1x128xf32>
    %cst_13 = arith.constant 5.000000e-01 : f32
    %26 = vector.broadcast %cst_13 : f32 to vector<1x128xf32>
    %27 = arith.mulf %26, %14 : vector<1x128xf32>
    %28 = arith.subf %12, %27 : vector<1x128xf32>
    %cst_14 = arith.constant 5.000000e-01 : f32
    %29 = vector.broadcast %cst_14 : f32 to vector<1x128xf32>
    %30 = arith.mulf %29, %14 : vector<1x128xf32>
    %31 = arith.addf %12, %30 : vector<1x128xf32>
    %cst_15 = arith.constant 5.000000e-01 : f32
    %32 = vector.broadcast %cst_15 : f32 to vector<8x1xf32>
    %33 = arith.mulf %32, %17 : vector<8x1xf32>
    %34 = arith.subf %15, %33 : vector<8x1xf32>
    %cst_16 = arith.constant 5.000000e-01 : f32
    %35 = vector.broadcast %cst_16 : f32 to vector<8x1xf32>
    %36 = arith.mulf %35, %17 : vector<8x1xf32>
    %37 = arith.addf %15, %36 : vector<8x1xf32>
    %cst_17 = arith.constant 5.000000e-01 : f32
    %38 = vector.broadcast %cst_17 : f32 to vector<8x1xf32>
    %39 = arith.mulf %38, %18 : vector<8x1xf32>
    %40 = arith.subf %16, %39 : vector<8x1xf32>
    %cst_18 = arith.constant 5.000000e-01 : f32
    %41 = vector.broadcast %cst_18 : f32 to vector<8x1xf32>
    %42 = arith.mulf %41, %18 : vector<8x1xf32>
    %43 = arith.addf %16, %42 : vector<8x1xf32>
    %44 = vector.broadcast %25 : vector<1x128xf32> to vector<8x128xf32>
    %45 = vector.broadcast %37 : vector<8x1xf32> to vector<8x128xf32>
    %46 = arith.minimumf %44, %45 : vector<8x128xf32>
    %47 = vector.broadcast %22 : vector<1x128xf32> to vector<8x128xf32>
    %48 = vector.broadcast %34 : vector<8x1xf32> to vector<8x128xf32>
    %49 = arith.maximumf %47, %48 : vector<8x128xf32>
    %50 = arith.subf %46, %49 : vector<8x128xf32>
    %cst_19 = arith.constant 0.000000e+00 : f32
    %51 = vector.broadcast %cst_19 : f32 to vector<8x128xf32>
    %52 = arith.maximumf %50, %51 : vector<8x128xf32>
    %53 = vector.broadcast %31 : vector<1x128xf32> to vector<8x128xf32>
    %54 = vector.broadcast %43 : vector<8x1xf32> to vector<8x128xf32>
    %55 = arith.minimumf %53, %54 : vector<8x128xf32>
    %56 = vector.broadcast %28 : vector<1x128xf32> to vector<8x128xf32>
    %57 = vector.broadcast %40 : vector<8x1xf32> to vector<8x128xf32>
    %58 = arith.maximumf %56, %57 : vector<8x128xf32>
    %59 = arith.subf %55, %58 : vector<8x128xf32>
    %cst_20 = arith.constant 0.000000e+00 : f32
    %60 = vector.broadcast %cst_20 : f32 to vector<8x128xf32>
    %61 = arith.maximumf %59, %60 : vector<8x128xf32>
    %62 = arith.mulf %52, %61 : vector<8x128xf32>
    %63 = arith.mulf %13, %14 : vector<1x128xf32>
    %64 = arith.mulf %17, %18 : vector<8x1xf32>
    %65 = vector.broadcast %63 : vector<1x128xf32> to vector<8x128xf32>
    %66 = vector.broadcast %64 : vector<8x1xf32> to vector<8x128xf32>
    %67 = arith.addf %65, %66 : vector<8x128xf32>
    %68 = arith.subf %67, %62 : vector<8x128xf32>
    %cst_21 = arith.constant 9.99999993E-9 : f32
    %69 = vector.broadcast %cst_21 : f32 to vector<8x128xf32>
    %70 = arith.addf %68, %69 : vector<8x128xf32>
    %71 = arith.divf %62, %70 : vector<8x128xf32>
    %cst_22 = arith.constant dense<0xFF800000> : vector<128xf32>
    %72 = vector.multi_reduction <maximumf>, %71, %cst_22 [0] : vector<8x128xf32> to vector<128xf32>
    %73 = vector.shape_cast %72 : vector<128xf32> to vector<1x128xf32>
    %74 = tpu.iota {dimensions = array<i32: 0>} : vector<8x128xi32>
    %75 = vector.broadcast %73 : vector<1x128xf32> to vector<8x128xf32>
    %76 = arith.cmpf oeq, %71, %75 : vector<8x128xf32>
    %c8_i32 = arith.constant 8 : i32
    %77 = vector.broadcast %c8_i32 : i32 to vector<8x128xi32>
    %78 = arith.select %76, %74, %77 : vector<8x128xi1>, vector<8x128xi32>
    %cst_23 = arith.constant dense<2147483647> : vector<128xi32>
    %79 = vector.multi_reduction <minsi>, %78, %cst_23 [0] : vector<8x128xi32> to vector<128xi32>
    %80 = vector.shape_cast %79 : vector<128xi32> to vector<1x128xi32>
    %cst_24 = arith.constant 5.000000e-01 : f32
    %81 = vector.broadcast %cst_24 : f32 to vector<1x128xf32>
    %82 = arith.cmpf ogt, %73, %81 : vector<1x128xf32>
    %cst_25 = arith.constant 4.000000e-01 : f32
    %83 = vector.broadcast %cst_25 : f32 to vector<1x128xf32>
    %84 = arith.cmpf olt, %73, %83 : vector<1x128xf32>
    %c-1_i32 = arith.constant -1 : i32
    %c-2_i32 = arith.constant -2 : i32
    %85 = vector.broadcast %c-1_i32 : i32 to vector<1x128xi32>
    %86 = vector.broadcast %c-2_i32 : i32 to vector<1x128xi32>
    %87 = arith.select %84, %85, %86 : vector<1x128xi1>, vector<1x128xi32>
    %88 = arith.select %82, %80, %87 : vector<1x128xi1>, vector<1x128xi32>
    %c0_i32_26 = arith.constant 0 : i32
    %89 = vector.broadcast %c0_i32_26 : i32 to vector<1x128xi32>
    %90 = arith.cmpi sge, %88, %89 : vector<1x128xi32>
    %91 = arith.extui %90 : vector<1x128xi1> to vector<1x128xi32>
    %92 = arith.sitofp %91 : vector<1x128xi32> to vector<1x128xf32>
    %c-1_i32_27 = arith.constant -1 : i32
    %93 = vector.broadcast %c-1_i32_27 : i32 to vector<1x128xi32>
    %94 = arith.cmpi sge, %88, %93 : vector<1x128xi32>
    %95 = arith.extui %94 : vector<1x128xi1> to vector<1x128xi32>
    %96 = arith.sitofp %95 : vector<1x128xi32> to vector<1x128xf32>
    %97 = vector.broadcast %88 : vector<1x128xi32> to vector<8x128xi32>
    %98 = arith.cmpi eq, %74, %97 : vector<8x128xi32>
    %99 = vector.broadcast %90 : vector<1x128xi1> to vector<8x128xi1>
    %100 = arith.andi %98, %99 : vector<8x128xi1>
    %cst_28 = arith.constant 1.000000e+00 : f32
    %cst_29 = arith.constant 0.000000e+00 : f32
    %101 = vector.broadcast %cst_28 : f32 to vector<8x128xf32>
    %102 = vector.broadcast %cst_29 : f32 to vector<8x128xf32>
    %103 = arith.select %100, %101, %102 : vector<8x128xi1>, vector<8x128xf32>
    %104 = vector.broadcast %15 : vector<8x1xf32> to vector<8x128xf32>
    %105 = arith.mulf %103, %104 : vector<8x128xf32>
    %cst_30 = arith.constant dense<0.000000e+00> : vector<128xf32>
    %106 = vector.multi_reduction <add>, %105, %cst_30 [0] : vector<8x128xf32> to vector<128xf32>
    %107 = vector.shape_cast %106 : vector<128xf32> to vector<1x128xf32>
    %108 = vector.broadcast %16 : vector<8x1xf32> to vector<8x128xf32>
    %109 = arith.mulf %103, %108 : vector<8x128xf32>
    %cst_31 = arith.constant dense<0.000000e+00> : vector<128xf32>
    %110 = vector.multi_reduction <add>, %109, %cst_31 [0] : vector<8x128xf32> to vector<128xf32>
    %111 = vector.shape_cast %110 : vector<128xf32> to vector<1x128xf32>
    %112 = vector.broadcast %17 : vector<8x1xf32> to vector<8x128xf32>
    %113 = arith.mulf %103, %112 : vector<8x128xf32>
    %cst_32 = arith.constant dense<0.000000e+00> : vector<128xf32>
    %114 = vector.multi_reduction <add>, %113, %cst_32 [0] : vector<8x128xf32> to vector<128xf32>
    %115 = vector.shape_cast %114 : vector<128xf32> to vector<1x128xf32>
    %116 = vector.broadcast %18 : vector<8x1xf32> to vector<8x128xf32>
    %117 = arith.mulf %103, %116 : vector<8x128xf32>
    %cst_33 = arith.constant dense<0.000000e+00> : vector<128xf32>
    %118 = vector.multi_reduction <add>, %117, %cst_33 [0] : vector<8x128xf32> to vector<128xf32>
    %119 = vector.shape_cast %118 : vector<128xf32> to vector<1x128xf32>
    %120 = vector.broadcast %19 : vector<8x1xf32> to vector<8x128xf32>
    %121 = arith.mulf %103, %120 : vector<8x128xf32>
    %cst_34 = arith.constant dense<0.000000e+00> : vector<128xf32>
    %122 = vector.multi_reduction <add>, %121, %cst_34 [0] : vector<8x128xf32> to vector<128xf32>
    %123 = vector.shape_cast %122 : vector<128xf32> to vector<1x128xf32>
    %cst_35 = arith.constant 1.000000e+00 : f32
    %124 = vector.broadcast %cst_35 : f32 to vector<1x128xf32>
    %125 = arith.divf %124, %13 : vector<1x128xf32>
    %cst_36 = arith.constant 1.000000e+00 : f32
    %126 = vector.broadcast %cst_36 : f32 to vector<1x128xf32>
    %127 = arith.divf %126, %14 : vector<1x128xf32>
    %128 = arith.subf %107, %11 : vector<1x128xf32>
    %129 = arith.mulf %128, %125 : vector<1x128xf32>
    %cst_37 = arith.constant 1.000000e+01 : f32
    %130 = vector.broadcast %cst_37 : f32 to vector<1x128xf32>
    %131 = arith.mulf %129, %130 : vector<1x128xf32>
    %132 = arith.subf %111, %12 : vector<1x128xf32>
    %133 = arith.mulf %132, %127 : vector<1x128xf32>
    %cst_38 = arith.constant 1.000000e+01 : f32
    %134 = vector.broadcast %cst_38 : f32 to vector<1x128xf32>
    %135 = arith.mulf %133, %134 : vector<1x128xf32>
    %136 = arith.mulf %115, %125 : vector<1x128xf32>
    %cst_39 = arith.constant 9.99999993E-9 : f32
    %137 = vector.broadcast %cst_39 : f32 to vector<1x128xf32>
    %138 = arith.addf %136, %137 : vector<1x128xf32>
    %139 = math.log %138 : vector<1x128xf32>
    %cst_40 = arith.constant 5.000000e+00 : f32
    %140 = vector.broadcast %cst_40 : f32 to vector<1x128xf32>
    %141 = arith.mulf %139, %140 : vector<1x128xf32>
    %142 = arith.mulf %119, %127 : vector<1x128xf32>
    %cst_41 = arith.constant 9.99999993E-9 : f32
    %143 = vector.broadcast %cst_41 : f32 to vector<1x128xf32>
    %144 = arith.addf %142, %143 : vector<1x128xf32>
    %145 = math.log %144 : vector<1x128xf32>
    %cst_42 = arith.constant 5.000000e+00 : f32
    %146 = vector.broadcast %cst_42 : f32 to vector<1x128xf32>
    %147 = arith.mulf %145, %146 : vector<1x128xf32>
    %148 = vector.extract_strided_slice %8 {offsets = [0, 0], sizes = [1, 128], strides = [1, 1]} : vector<4x128xf32> to vector<1x128xf32>
    %149 = arith.subf %148, %131 : vector<1x128xf32>
    %150 = math.absf %149 : vector<1x128xf32>
    %cst_43 = arith.constant 0.111111112 : f32
    %151 = vector.broadcast %cst_43 : f32 to vector<1x128xf32>
    %152 = arith.cmpf olt, %150, %151 : vector<1x128xf32>
    %cst_44 = arith.constant 4.500000e+00 : f32
    %153 = vector.broadcast %cst_44 : f32 to vector<1x128xf32>
    %154 = arith.mulf %153, %150 : vector<1x128xf32>
    %155 = arith.mulf %154, %150 : vector<1x128xf32>
    %cst_45 = arith.constant 0.055555556 : f32
    %156 = vector.broadcast %cst_45 : f32 to vector<1x128xf32>
    %157 = arith.subf %150, %156 : vector<1x128xf32>
    %158 = arith.select %152, %155, %157 : vector<1x128xi1>, vector<1x128xf32>
    %159 = vector.extract_strided_slice %8 {offsets = [1, 0], sizes = [1, 128], strides = [1, 1]} : vector<4x128xf32> to vector<1x128xf32>
    %160 = arith.subf %159, %135 : vector<1x128xf32>
    %161 = math.absf %160 : vector<1x128xf32>
    %cst_46 = arith.constant 0.111111112 : f32
    %162 = vector.broadcast %cst_46 : f32 to vector<1x128xf32>
    %163 = arith.cmpf olt, %161, %162 : vector<1x128xf32>
    %cst_47 = arith.constant 4.500000e+00 : f32
    %164 = vector.broadcast %cst_47 : f32 to vector<1x128xf32>
    %165 = arith.mulf %164, %161 : vector<1x128xf32>
    %166 = arith.mulf %165, %161 : vector<1x128xf32>
    %cst_48 = arith.constant 0.055555556 : f32
    %167 = vector.broadcast %cst_48 : f32 to vector<1x128xf32>
    %168 = arith.subf %161, %167 : vector<1x128xf32>
    %169 = arith.select %163, %166, %168 : vector<1x128xi1>, vector<1x128xf32>
    %170 = arith.addf %158, %169 : vector<1x128xf32>
    %171 = vector.extract_strided_slice %8 {offsets = [2, 0], sizes = [1, 128], strides = [1, 1]} : vector<4x128xf32> to vector<1x128xf32>
    %172 = arith.subf %171, %141 : vector<1x128xf32>
    %173 = math.absf %172 : vector<1x128xf32>
    %cst_49 = arith.constant 0.111111112 : f32
    %174 = vector.broadcast %cst_49 : f32 to vector<1x128xf32>
    %175 = arith.cmpf olt, %173, %174 : vector<1x128xf32>
    %cst_50 = arith.constant 4.500000e+00 : f32
    %176 = vector.broadcast %cst_50 : f32 to vector<1x128xf32>
    %177 = arith.mulf %176, %173 : vector<1x128xf32>
    %178 = arith.mulf %177, %173 : vector<1x128xf32>
    %cst_51 = arith.constant 0.055555556 : f32
    %179 = vector.broadcast %cst_51 : f32 to vector<1x128xf32>
    %180 = arith.subf %173, %179 : vector<1x128xf32>
    %181 = arith.select %175, %178, %180 : vector<1x128xi1>, vector<1x128xf32>
    %182 = arith.addf %170, %181 : vector<1x128xf32>
    %183 = vector.extract_strided_slice %8 {offsets = [3, 0], sizes = [1, 128], strides = [1, 1]} : vector<4x128xf32> to vector<1x128xf32>
    %184 = arith.subf %183, %147 : vector<1x128xf32>
    %185 = math.absf %184 : vector<1x128xf32>
    %cst_52 = arith.constant 0.111111112 : f32
    %186 = vector.broadcast %cst_52 : f32 to vector<1x128xf32>
    %187 = arith.cmpf olt, %185, %186 : vector<1x128xf32>
    %cst_53 = arith.constant 4.500000e+00 : f32
    %188 = vector.broadcast %cst_53 : f32 to vector<1x128xf32>
    %189 = arith.mulf %188, %185 : vector<1x128xf32>
    %190 = arith.mulf %189, %185 : vector<1x128xf32>
    %cst_54 = arith.constant 0.055555556 : f32
    %191 = vector.broadcast %cst_54 : f32 to vector<1x128xf32>
    %192 = arith.subf %185, %191 : vector<1x128xf32>
    %193 = arith.select %187, %190, %192 : vector<1x128xi1>, vector<1x128xf32>
    %194 = arith.addf %182, %193 : vector<1x128xf32>
    %195 = arith.mulf %194, %92 : vector<1x128xf32>
    %cst_55 = arith.constant 1.000000e+00 : f32
    %196 = vector.broadcast %cst_55 : f32 to vector<4x128xf32>
    %197 = arith.addf %6, %196 : vector<4x128xf32>
    %198 = tpu.iota {dimensions = array<i32: 0>} : vector<4x128xi32>
    %199 = arith.sitofp %198 : vector<4x128xi32> to vector<4x128xf32>
    %cst_56 = arith.constant 1.000000e+00 : f32
    %200 = vector.broadcast %cst_56 : f32 to vector<1x128xf32>
    %201 = arith.subf %123, %200 : vector<1x128xf32>
    %202 = vector.broadcast %201 : vector<1x128xf32> to vector<4x128xf32>
    %203 = arith.cmpf oeq, %199, %202 : vector<4x128xf32>
    %cst_57 = arith.constant 1.000000e+00 : f32
    %cst_58 = arith.constant 0.000000e+00 : f32
    %204 = vector.broadcast %cst_57 : f32 to vector<4x128xf32>
    %205 = vector.broadcast %cst_58 : f32 to vector<4x128xf32>
    %206 = arith.select %203, %204, %205 : vector<4x128xi1>, vector<4x128xf32>
    %207 = math.absf %197 : vector<4x128xf32>
    %cst_59 = arith.constant 0.000000e+00 : f32
    %208 = vector.broadcast %cst_59 : f32 to vector<4x128xf32>
    %209 = arith.subf %208, %207 : vector<4x128xf32>
    %210 = math.exp %209 : vector<4x128xf32>
    %cst_60 = arith.constant 1.000000e+00 : f32
    %211 = vector.broadcast %cst_60 : f32 to vector<4x128xf32>
    %212 = arith.addf %211, %210 : vector<4x128xf32>
    %cst_61 = arith.constant 1.000000e+00 : f32
    %213 = vector.broadcast %cst_61 : f32 to vector<4x128xf32>
    %214 = arith.divf %213, %212 : vector<4x128xf32>
    %cst_62 = arith.constant 0.000000e+00 : f32
    %215 = vector.broadcast %cst_62 : f32 to vector<4x128xf32>
    %216 = arith.cmpf oge, %197, %215 : vector<4x128xf32>
    %217 = arith.mulf %210, %214 : vector<4x128xf32>
    %218 = arith.select %216, %214, %217 : vector<4x128xi1>, vector<4x128xf32>
    %cst_63 = arith.constant 1.000000e+00 : f32
    %219 = vector.broadcast %cst_63 : f32 to vector<4x128xf32>
    %220 = arith.subf %219, %218 : vector<4x128xf32>
    %221 = arith.mulf %206, %220 : vector<4x128xf32>
    %cst_64 = arith.constant 1.000000e+00 : f32
    %222 = vector.broadcast %cst_64 : f32 to vector<4x128xf32>
    %223 = arith.subf %222, %206 : vector<4x128xf32>
    %224 = arith.mulf %223, %218 : vector<4x128xf32>
    %225 = arith.addf %221, %224 : vector<4x128xf32>
    %cst_65 = arith.constant 1.000000e+00 : f32
    %226 = vector.broadcast %cst_65 : f32 to vector<4x128xf32>
    %227 = arith.subf %226, %206 : vector<4x128xf32>
    %cst_66 = arith.constant 2.500000e-01 : f32
    %228 = vector.broadcast %cst_66 : f32 to vector<4x128xf32>
    %229 = arith.mulf %227, %228 : vector<4x128xf32>
    %cst_67 = arith.constant 7.500000e-01 : f32
    %230 = vector.broadcast %cst_67 : f32 to vector<4x128xf32>
    %231 = arith.mulf %206, %230 : vector<4x128xf32>
    %232 = arith.addf %229, %231 : vector<4x128xf32>
    %233 = arith.mulf %225, %225 : vector<4x128xf32>
    %234 = arith.mulf %233, %232 : vector<4x128xf32>
    %cst_68 = arith.constant 0.000000e+00 : f32
    %235 = vector.broadcast %cst_68 : f32 to vector<4x128xf32>
    %236 = arith.maximumf %197, %235 : vector<4x128xf32>
    %237 = arith.mulf %197, %206 : vector<4x128xf32>
    %238 = arith.subf %236, %237 : vector<4x128xf32>
    %239 = math.log %212 : vector<4x128xf32>
    %240 = arith.addf %238, %239 : vector<4x128xf32>
    %241 = arith.mulf %234, %240 : vector<4x128xf32>
    %242 = vector.broadcast %96 : vector<1x128xf32> to vector<4x128xf32>
    %243 = arith.mulf %241, %242 : vector<4x128xf32>
    %c0_69 = arith.constant 0 : index
    %c0_70 = arith.constant 0 : index
    %c0_71 = arith.constant 0 : index
    %244 = vector.load %arg6[%c0_69, %c0_70, %c0_71] : memref<1x1x1xf32, #tpu.memory_space<vmem>>, vector<1x1x1xf32>
    %245 = vector.shape_cast %244 : vector<1x1x1xf32> to vector<1x1xf32>
    %246 = vector.shape_cast %195 : vector<1x128xf32> to vector<1x1x128xf32>
    %cst_72 = arith.constant dense<0.000000e+00> : vector<1xf32>
    %247 = vector.multi_reduction <add>, %246, %cst_72 [1, 2] : vector<1x1x128xf32> to vector<1xf32>
    %248 = vector.shape_cast %247 : vector<1xf32> to vector<1x1x1xf32>
    %249 = vector.extract %248[0, 0, 0] : f32 from vector<1x1x1xf32>
    %250 = vector.broadcast %249 : f32 to vector<1x1xf32>
    %251 = arith.addf %245, %250 : vector<1x1xf32>
    %c0_73 = arith.constant 0 : index
    %c0_74 = arith.constant 0 : index
    %c0_75 = arith.constant 0 : index
    %252 = vector.load %arg6[%c0_73, %c0_74, %c0_75] : memref<1x1x1xf32, #tpu.memory_space<vmem>>, vector<1x1x1xf32>
    %253 = vector.shape_cast %252 : vector<1x1x1xf32> to vector<1x1xf32>
    %254 = vector.shape_cast %251 : vector<1x1xf32> to vector<1x1x1xf32>
    tpu.vector_store %arg6[%c0_73, %c0_74, %c0_75], %254 {strides = array<i32>} : memref<1x1x1xf32, #tpu.memory_space<vmem>>, vector<1x1x1xf32>,
    %c0_76 = arith.constant 0 : index
    %c0_77 = arith.constant 0 : index
    %c0_78 = arith.constant 0 : index
    %255 = vector.load %arg7[%c0_76, %c0_77, %c0_78] : memref<1x1x1xf32, #tpu.memory_space<vmem>>, vector<1x1x1xf32>
    %256 = vector.shape_cast %255 : vector<1x1x1xf32> to vector<1x1xf32>
    %257 = vector.shape_cast %243 : vector<4x128xf32> to vector<1x4x128xf32>
    %cst_79 = arith.constant dense<0.000000e+00> : vector<1xf32>
    %258 = vector.multi_reduction <add>, %257, %cst_79 [1, 2] : vector<1x4x128xf32> to vector<1xf32>
    %259 = vector.shape_cast %258 : vector<1xf32> to vector<1x1x1xf32>
    %260 = vector.extract %259[0, 0, 0] : f32 from vector<1x1x1xf32>
    %261 = vector.broadcast %260 : f32 to vector<1x1xf32>
    %262 = arith.addf %256, %261 : vector<1x1xf32>
    %c0_80 = arith.constant 0 : index
    %c0_81 = arith.constant 0 : index
    %c0_82 = arith.constant 0 : index
    %263 = vector.load %arg7[%c0_80, %c0_81, %c0_82] : memref<1x1x1xf32, #tpu.memory_space<vmem>>, vector<1x1x1xf32>
    %264 = vector.shape_cast %263 : vector<1x1x1xf32> to vector<1x1xf32>
    %265 = vector.shape_cast %262 : vector<1x1xf32> to vector<1x1x1xf32>
    tpu.vector_store %arg7[%c0_80, %c0_81, %c0_82], %265 {strides = array<i32>} : memref<1x1x1xf32, #tpu.memory_space<vmem>>, vector<1x1x1xf32>,
    %c0_83 = arith.constant 0 : index
    %c0_84 = arith.constant 0 : index
    %c0_85 = arith.constant 0 : index
    %266 = vector.load %arg8[%c0_83, %c0_84, %c0_85] : memref<1x1x1xf32, #tpu.memory_space<vmem>>, vector<1x1x1xf32>
    %267 = vector.shape_cast %266 : vector<1x1x1xf32> to vector<1x1xf32>
    %268 = vector.shape_cast %92 : vector<1x128xf32> to vector<1x1x128xf32>
    %cst_86 = arith.constant dense<0.000000e+00> : vector<1xf32>
    %269 = vector.multi_reduction <add>, %268, %cst_86 [1, 2] : vector<1x1x128xf32> to vector<1xf32>
    %270 = vector.shape_cast %269 : vector<1xf32> to vector<1x1x1xf32>
    %271 = vector.extract %270[0, 0, 0] : f32 from vector<1x1x1xf32>
    %272 = vector.broadcast %271 : f32 to vector<1x1xf32>
    %273 = arith.addf %267, %272 : vector<1x1xf32>
    %c0_87 = arith.constant 0 : index
    %c0_88 = arith.constant 0 : index
    %c0_89 = arith.constant 0 : index
    %274 = vector.load %arg8[%c0_87, %c0_88, %c0_89] : memref<1x1x1xf32, #tpu.memory_space<vmem>>, vector<1x1x1xf32>
    %275 = vector.shape_cast %274 : vector<1x1x1xf32> to vector<1x1xf32>
    %276 = vector.shape_cast %273 : vector<1x1xf32> to vector<1x1x1xf32>
    tpu.vector_store %arg8[%c0_87, %c0_88, %c0_89], %276 {strides = array<i32>} : memref<1x1x1xf32, #tpu.memory_space<vmem>>, vector<1x1x1xf32>,
    return
  }
  func.func @transform_0(%arg0: i32, %arg1: i32) -> (i32, i32, i32) {
    %c0_i32 = arith.constant 0 : i32
    %c0_i32_0 = arith.constant 0 : i32
    return %arg0, %c0_i32, %arg1 : i32, i32, i32
  }
  func.func @transform_1(%arg0: i32, %arg1: i32) -> (i32, i32, i32) {
    %c0_i32 = arith.constant 0 : i32
    %c0_i32_0 = arith.constant 0 : i32
    return %arg0, %c0_i32, %arg1 : i32, i32, i32
  }
  func.func @transform_2(%arg0: i32, %arg1: i32) -> (i32, i32, i32) {
    %c0_i32 = arith.constant 0 : i32
    %c0_i32_0 = arith.constant 0 : i32
    return %arg0, %c0_i32, %arg1 : i32, i32, i32
  }
  func.func @transform_3(%arg0: i32, %arg1: i32) -> (i32, i32, i32) {
    %c0_i32 = arith.constant 0 : i32
    %c0_i32_0 = arith.constant 0 : i32
    %c0_i32_1 = arith.constant 0 : i32
    return %arg0, %c0_i32, %c0_i32_0 : i32, i32, i32
  }
  func.func @transform_4(%arg0: i32, %arg1: i32) -> (i32, i32, i32) {
    %c0_i32 = arith.constant 0 : i32
    %c0_i32_0 = arith.constant 0 : i32
    %c0_i32_1 = arith.constant 0 : i32
    return %arg0, %c0_i32, %c0_i32_0 : i32, i32, i32
  }
  func.func @transform_5(%arg0: i32, %arg1: i32) -> (i32, i32, i32) {
    %c0_i32 = arith.constant 0 : i32
    %c0_i32_0 = arith.constant 0 : i32
    %c0_i32_1 = arith.constant 0 : i32
    return %arg0, %c0_i32, %c0_i32_0 : i32, i32, i32
  }
  func.func @transform_6(%arg0: i32, %arg1: i32) -> (i32, i32, i32) {
    %c0_i32 = arith.constant 0 : i32
    %c0_i32_0 = arith.constant 0 : i32
    %c0_i32_1 = arith.constant 0 : i32
    return %arg0, %c0_i32, %c0_i32_0 : i32, i32, i32
  }
}

</mosaic_0001>

<llo_original>
// kernel: tpu_custom_call.1
$region0: #{tpu_custom_call.1}
  #allocation0 [shape = 'u32[]', space=smem, size = 0x4, offset = 0x4, fixed_abs, tag = 'smem constant byte address 0x4 - core index']
  #allocation1 [shape = 'u32[144,128]{1,0:T(1,128)}', space=vmem, size = 0x12000, scoped, tag = 'internal scratch']
  %s0 = inlined_call_operand.vmem [shape: f32[2,4,256], index: 0, kind: input, shape index: {}]
  %s1 = inlined_call_operand.hbm [shape: f32[2,4,256], index: 1, kind: input, shape index: {}]
  %s2 = inlined_call_operand.hbm [shape: f32[2,4,256], index: 2, kind: input, shape index: {}]
  %s3 = inlined_call_operand.vmem [shape: f32[2,8,5], index: 3, kind: input, shape index: {}]
  %s4 = inlined_call_operand.vmem [shape: f32[2,1,1], index: 4, kind: output, shape index: {0}]
  %s5 = inlined_call_operand.vmem [shape: f32[2,1,1], index: 5, kind: output, shape index: {1}]
  %s6 = inlined_call_operand.vmem [shape: f32[2,1,1], index: 6, kind: output, shape index: {2}]
  %7 = xla_tuple %s4, %s5, %s6
  %s8 = sld [smem:[#allocation0]]
  $region77: #{tpu_custom_call.1} parent=0
    _
  %s10 = ssub.s32 1, %s8
  %s11 = scalar_select 0, %s10, %s8
  $region1: #{tpu_custom_call.1} parent=0
    #allocation2 [shape = 'u8[4096]{0}', space=vmem, size = 0x1000, scoped, tag = 'input window, operand 1']
    #allocation3 [shape = 's32[2]{0}', space=sflag, size = 0x8, scoped, tag = 'scoped memory for tpu_custom_call.1']
    #allocation4 [shape = 'u8[4096]{0}', space=vmem, size = 0x1000, scoped, tag = 'input window, operand 2']
    #allocation5 [shape = 's32[2]{0}', space=sflag, size = 0x8, scoped, tag = 'scoped memory for tpu_custom_call.1']
    %12 = vsyncpa [#allocation3], 0
    %s13 = scalar_lea.sflag [#allocation3], 1
    %14 = vsyncpa %s13, 0
    %15 = vsyncpa [#allocation5], 0
    %s16 = scalar_lea.sflag [#allocation5], 1
    %17 = vsyncpa %s16, 0
    loop: start=0, step=1, limit=6
    $region2: #{tpu_custom_call.1} parent=1 // loop_pre_header
      _
    $region3: #{tpu_custom_call.1} parent=1 // loop_header
      %s19 = sphi 0, %s23
      %p20 = scmp.ge.s32.totalorder %s19, 6
      %s26 = sphi 0, %s38
      %s27 = sphi 0, %s34
      %s28 = sphi 0, %s26
      %s29 = sphi 0, %s27
      %s30 = sphi 0, %s28
      %s31 = sphi 0, %s29
      %s43 = sphi 0, %s45
      %s46 = sphi 0, %s43
      %s47 = sphi 0, %s46
      %s63 = sphi 0, %s47
      %s71 = sphi 0, %s73
      %s74 = sphi 0, %s71
      %s75 = sphi 0, %s74
      %s91 = sphi 0, %s75
      %s99 = sphi 0, %s101
      %s102 = sphi 0, %s99
      %s103 = sphi 0, %s102
      %s119 = sphi 0, %s103
      %s125 = sphi 0, %s127
      %s128 = sphi 0, %s125
      %s129 = sphi 0, %s128
      %s145 = sphi 0, %s129
      %s151 = sphi 0, %s153
      %s154 = sphi 0, %s151
      %s155 = sphi 0, %s154
      %s171 = sphi 0, %s155
      %s177 = sphi 0, %s179
      %s180 = sphi 0, %s177
      %s181 = sphi 0, %s180
      %s197 = sphi 0, %s181
      %s203 = sphi 0, %s205
      %s206 = sphi 0, %s203
      %s207 = sphi 0, %s206
      %s223 = sphi 0, %s207
    $region4: #{tpu_custom_call.1} parent=1 // loop_header_branch
      %22 = sbr.rel (%p20) target = $region8
    $region5: #{tpu_custom_call.1} parent=1 // loop_body
      %s24 = ssub.s32 %s19, 1
      %s25 = ssub.s32 %s19, 2
      %s32 = sadd.s32 1, %s27
      %p33 = scmp.ge.s32.totalorder %s32, 2
      %s34 = scalar_select %p33, 0, %s32
      %s35 = sadd.s32 1, %s26
      %s36 = scalar_select %p33, %s35, %s26
      %p37 = scmp.ge.s32.totalorder %s36, 2
      %s38 = scalar_select %p37, 0, %s36
      %s39 = ssub.s32 %s26, %s38
      %s40 = ssub.s32 %s27, %s34
      %s41 = sor.u32 %s39, %s40
      %p42 = scmp.eq.s32.totalorder %s41, 0
      %s44 = sadd.s32 %s43, 1
      %s45 = scalar_select %p42, %s43, %s44
      %p48 = pneg %p42
      %p49 = scmp.eq.s32.totalorder %s19, 3
      %p50 = por %p48, %p49
      %p51 = scmp.ne.s32.totalorder %s43, %s46
      %p52 = scmp.eq.s32.totalorder %s19, 0
      %p53 = por %p51, %p52
      %p54 = scmp.ne.s32.totalorder %s43, %s46
      %p55 = scmp.eq.s32.totalorder %s24, 3
      %p56 = por %p54, %p55
      %p57 = scmp.ne.s32.totalorder %s46, %s47
      %p58 = scmp.eq.s32.totalorder %s24, 0
      %p59 = por %p57, %p58
      %p60 = scmp.ne.s32.totalorder %s46, %s47
      %p61 = scmp.eq.s32.totalorder %s25, 3
      %p62 = por %p60, %p61
      %p64 = scmp.ne.s32.totalorder %s47, %s63
      %p65 = scmp.eq.s32.totalorder %s25, 0
      %p66 = por %p64, %p65
      %s67 = ssub.s32 %s26, %s38
      %s68 = ssub.s32 %s27, %s34
      %s69 = sor.u32 %s67, %s68
      %p70 = scmp.eq.s32.totalorder %s69, 0
      %s72 = sadd.s32 %s71, 1
      %s73 = scalar_select %p70, %s71, %s72
      %p76 = pneg %p70
      %p77 = scmp.eq.s32.totalorder %s19, 3
      %p78 = por %p76, %p77
      %p79 = scmp.ne.s32.totalorder %s71, %s74
      %p80 = scmp.eq.s32.totalorder %s19, 0
      %p81 = por %p79, %p80
      %p82 = scmp.ne.s32.totalorder %s71, %s74
      %p83 = scmp.eq.s32.totalorder %s24, 3
      %p84 = por %p82, %p83
      %p85 = scmp.ne.s32.totalorder %s74, %s75
      %p86 = scmp.eq.s32.totalorder %s24, 0
      %p87 = por %p85, %p86
      %p88 = scmp.ne.s32.totalorder %s74, %s75
      %p89 = scmp.eq.s32.totalorder %s25, 3
      %p90 = por %p88, %p89
      %p92 = scmp.ne.s32.totalorder %s75, %s91
      %p93 = scmp.eq.s32.totalorder %s25, 0
      %p94 = por %p92, %p93
      %s95 = ssub.s32 %s26, %s38
      %s96 = ssub.s32 %s27, %s34
      %s97 = sor.u32 %s95, %s96
      %p98 = scmp.eq.s32.totalorder %s97, 0
      %s100 = sadd.s32 %s99, 1
      %s101 = scalar_select %p98, %s99, %s100
      %p104 = pneg %p98
      %p105 = scmp.eq.s32.totalorder %s19, 3
      %p106 = por %p104, %p105
      %p107 = scmp.ne.s32.totalorder %s99, %s102
      %p108 = scmp.eq.s32.totalorder %s19, 0
      %p109 = por %p107, %p108
      %p110 = scmp.ne.s32.totalorder %s99, %s102
      %p111 = scmp.eq.s32.totalorder %s24, 3
      %p112 = por %p110, %p111
      %p113 = scmp.ne.s32.totalorder %s102, %s103
      %p114 = scmp.eq.s32.totalorder %s24, 0
      %p115 = por %p113, %p114
      %p116 = scmp.ne.s32.totalorder %s102, %s103
      %p117 = scmp.eq.s32.totalorder %s25, 3
      %p118 = por %p116, %p117
      %p120 = scmp.ne.s32.totalorder %s103, %s119
      %p121 = scmp.eq.s32.totalorder %s25, 0
      %p122 = por %p120, %p121
      %s123 = ssub.s32 %s26, %s38
      %p124 = scmp.eq.s32.totalorder %s123, 0
      %s126 = sadd.s32 %s125, 1
      %s127 = scalar_select %p124, %s125, %s126
      %p130 = pneg %p124
      %p131 = scmp.eq.s32.totalorder %s19, 3
      %p132 = por %p130, %p131
      %p133 = scmp.ne.s32.totalorder %s125, %s128
      %p134 = scmp.eq.s32.totalorder %s19, 0
      %p135 = por %p133, %p134
      %p136 = scmp.ne.s32.totalorder %s125, %s128
      %p137 = scmp.eq.s32.totalorder %s24, 3
      %p138 = por %p136, %p137
      %p139 = scmp.ne.s32.totalorder %s128, %s129
      %p140 = scmp.eq.s32.totalorder %s24, 0
      %p141 = por %p139, %p140
      %p142 = scmp.ne.s32.totalorder %s128, %s129
      %p143 = scmp.eq.s32.totalorder %s25, 3
      %p144 = por %p142, %p143
      %p146 = scmp.ne.s32.totalorder %s129, %s145
      %p147 = scmp.eq.s32.totalorder %s25, 0
      %p148 = por %p146, %p147
      %s149 = ssub.s32 %s26, %s38
      %p150 = scmp.eq.s32.totalorder %s149, 0
      %s152 = sadd.s32 %s151, 1
      %s153 = scalar_select %p150, %s151, %s152
      %p156 = pneg %p150
      %p157 = scmp.eq.s32.totalorder %s19, 3
      %p158 = por %p156, %p157
      %p159 = scmp.ne.s32.totalorder %s151, %s154
      %p160 = scmp.eq.s32.totalorder %s19, 0
      %p161 = por %p159, %p160
      %p162 = scmp.ne.s32.totalorder %s151, %s154
      %p163 = scmp.eq.s32.totalorder %s24, 3
      %p164 = por %p162, %p163
      %p165 = scmp.ne.s32.totalorder %s154, %s155
      %p166 = scmp.eq.s32.totalorder %s24, 0
      %p167 = por %p165, %p166
      %p168 = scmp.ne.s32.totalorder %s154, %s155
      %p169 = scmp.eq.s32.totalorder %s25, 3
      %p170 = por %p168, %p169
      %p172 = scmp.ne.s32.totalorder %s155, %s171
      %p173 = scmp.eq.s32.totalorder %s25, 0
      %p174 = por %p172, %p173
      %s175 = ssub.s32 %s26, %s38
      %p176 = scmp.eq.s32.totalorder %s175, 0
      %s178 = sadd.s32 %s177, 1
      %s179 = scalar_select %p176, %s177, %s178
      %p182 = pneg %p176
      %p183 = scmp.eq.s32.totalorder %s19, 3
      %p184 = por %p182, %p183
      %p185 = scmp.ne.s32.totalorder %s177, %s180
      %p186 = scmp.eq.s32.totalorder %s19, 0
      %p187 = por %p185, %p186
      %p188 = scmp.ne.s32.totalorder %s177, %s180
      %p189 = scmp.eq.s32.totalorder %s24, 3
      %p190 = por %p188, %p189
      %p191 = scmp.ne.s32.totalorder %s180, %s181
      %p192 = scmp.eq.s32.totalorder %s24, 0
      %p193 = por %p191, %p192
      %p194 = scmp.ne.s32.totalorder %s180, %s181
      %p195 = scmp.eq.s32.totalorder %s25, 3
      %p196 = por %p194, %p195
      %p198 = scmp.ne.s32.totalorder %s181, %s197
      %p199 = scmp.eq.s32.totalorder %s25, 0
      %p200 = por %p198, %p199
      %s201 = ssub.s32 %s26, %s38
      %p202 = scmp.eq.s32.totalorder %s201, 0
      %s204 = sadd.s32 %s203, 1
      %s205 = scalar_select %p202, %s203, %s204
      %p208 = pneg %p202
      %p209 = scmp.eq.s32.totalorder %s19, 3
      %p210 = por %p208, %p209
      %p211 = scmp.ne.s32.totalorder %s203, %s206
      %p212 = scmp.eq.s32.totalorder %s19, 0
      %p213 = por %p211, %p212
      %p214 = scmp.ne.s32.totalorder %s203, %s206
      %p215 = scmp.eq.s32.totalorder %s24, 3
      %p216 = por %p214, %p215
      %p217 = scmp.ne.s32.totalorder %s206, %s207
      %p218 = scmp.eq.s32.totalorder %s24, 0
      %p219 = por %p217, %p218
      %p220 = scmp.ne.s32.totalorder %s206, %s207
      %p221 = scmp.eq.s32.totalorder %s25, 3
      %p222 = por %p220, %p221
      %p224 = scmp.ne.s32.totalorder %s207, %s223
      %p225 = scmp.eq.s32.totalorder %s25, 0
      %p226 = por %p224, %p225
      %p227 = scmp.le.s32.totalorder 1, %s19
      %p228 = scmp.lt.s32.totalorder %s19, 5
      %p229 = pnand %p227, %p228
      %p230 = pneg %p229
      // Predicated region
      $region9: #{tpu_custom_call.1} parent=5 // pred_check
        _
      $region10: #{tpu_custom_call.1} parent=5 // pred_check_branch
        %232 = sbr.rel (%p229) target = $region12
      $region11: #{tpu_custom_call.1} parent=5 // pred_region
        %s233 = ssub.s32 %s19, 1
      $region12: #{tpu_custom_call.1} parent=5 // pred_fallthru
        _
      %p234 = scmp.lt.s32.totalorder %s19, 4
      // Predicated region
      $region13: #{tpu_custom_call.1} parent=5 // pred_check
        %p235 = pneg %p234
      $region14: #{tpu_custom_call.1} parent=5 // pred_check_branch
        %237 = sbr.rel (%p235) target = $region16
      $region15: #{tpu_custom_call.1} parent=5 // pred_region
        // Predicated region
        $region17: #{tpu_custom_call.1} parent=15 // pred_check
          %p238 = pneg %p53
        $region18: #{tpu_custom_call.1} parent=15 // pred_check_branch
          %240 = sbr.rel (%p238) target = $region20
        $region19: #{tpu_custom_call.1} parent=15 // pred_region
          %p241 = scmp.lt.s32.totalorder %s26, 1
          %s242 = scalar_select %p241, %s26, 1
          %p243 = scmp.lt.s32.totalorder %s27, 1
          %s244 = scalar_select %p243, %s27, 1
          %s245 = smul.addr %s242, 2
          %s246 = sadd.s32 %s244, %s245
          %s247 = smul.addr %s246, 4
          %s248 = scalar_lea.vmem %s0, %s247
        $region20: #{tpu_custom_call.1} parent=15 // pred_fallthru
          _
        // Predicated region
        $region21: #{tpu_custom_call.1} parent=15 // pred_check
          %p249 = pneg %p81
        $region22: #{tpu_custom_call.1} parent=15 // pred_check_branch
          %251 = sbr.rel (%p249) target = $region24
        $region23: #{tpu_custom_call.1} parent=15 // pred_region
          %s252 = sand.u32 %s71, 1
          %s253 = scalar_lea.sflag [#allocation3], %s252
          %s254 = sand.u32 %s71, 1
          %s255 = smul.addr %s254, 4
          %s256 = scalar_lea.vmem [#allocation2], %s255
          %s258 = ssub.s32 64, 64
          %259 = vsyncadd %s253, %s258
          %s260 = smul.addr %s26, 2
          %s261 = sadd.s32 %s27, %s260
          %s262 = smul.addr %s261, 64
          %s263 = scalar_lea.hbm %s1, %s262
          %s265 = sshll.u32 %s256, 4
          %s266 = int_to_ptr.vmem [resolvable:$true] %s265
          %268 = dma.hbm_to_vmem [thread:$0]  %s263, 64, %s266, %s253
        $region24: #{tpu_custom_call.1} parent=15 // pred_fallthru
          _
        // Predicated region
        $region25: #{tpu_custom_call.1} parent=15 // pred_check
          %p269 = pneg %p109
        $region26: #{tpu_custom_call.1} parent=15 // pred_check_branch
          %271 = sbr.rel (%p269) target = $region28
        $region27: #{tpu_custom_call.1} parent=15 // pred_region
          %s272 = sand.u32 %s99, 1
          %s273 = scalar_lea.sflag [#allocation5], %s272
          %s274 = sand.u32 %s99, 1
          %s275 = smul.addr %s274, 4
          %s276 = scalar_lea.vmem [#allocation4], %s275
          %s278 = ssub.s32 64, 64
          %279 = vsyncadd %s273, %s278
          %s280 = smul.addr %s26, 2
          %s281 = sadd.s32 %s27, %s280
          %s282 = smul.addr %s281, 64
          %s283 = scalar_lea.hbm %s2, %s282
          %s285 = sshll.u32 %s276, 4
          %s286 = int_to_ptr.vmem [resolvable:$true] %s285
          %288 = dma.hbm_to_vmem [thread:$0]  %s283, 64, %s286, %s273
        $region28: #{tpu_custom_call.1} parent=15 // pred_fallthru
          _
        // Predicated region
        $region29: #{tpu_custom_call.1} parent=15 // pred_check
          %p289 = pneg %p135
        $region30: #{tpu_custom_call.1} parent=15 // pred_check_branch
          %291 = sbr.rel (%p289) target = $region32
        $region31: #{tpu_custom_call.1} parent=15 // pred_region
          %p292 = scmp.lt.s32.totalorder %s26, 1
          %s293 = scalar_select %p292, %s26, 1
          %s294 = smul.addr %s293, 8
          %s295 = scalar_lea.vmem %s3, %s294
        $region32: #{tpu_custom_call.1} parent=15 // pred_fallthru
          _
      $region16: #{tpu_custom_call.1} parent=5 // pred_fallthru
        _
      %p296 = scmp.le.s32.totalorder 1, %s19
      %p297 = scmp.lt.s32.totalorder %s19, 5
      %p298 = pnand %p296, %p297
      %p299 = pneg %p298
      // Predicated region
      $region33: #{tpu_custom_call.1} parent=5 // pred_check
        _
      $region34: #{tpu_custom_call.1} parent=5 // pred_check_branch
        %301 = sbr.rel (%p298) target = $region36
      $region35: #{tpu_custom_call.1} parent=5 // pred_region
        %s302 = ssub.s32 %s19, 1
        %s303 = sand.u32 %s74, 1
        %s304 = scalar_lea.sflag [#allocation3], %s303
        %s305 = sand.u32 %s74, 1
        %s306 = smul.addr %s305, 4
        %s307 = scalar_lea.vmem [#allocation2], %s306
        // Predicated region
        $region37: #{tpu_custom_call.1} parent=35 // pred_check
          %p308 = pneg %p87
        $region38: #{tpu_custom_call.1} parent=35 // pred_check_branch
          %310 = sbr.rel (%p308) target = $region40
        $region39: #{tpu_custom_call.1} parent=35 // pred_region
          %311 = dma.done %s304, 64
        $region40: #{tpu_custom_call.1} parent=35 // pred_fallthru
          _
        %s312 = sand.u32 %s102, 1
        %s313 = scalar_lea.sflag [#allocation5], %s312
        %s314 = sand.u32 %s102, 1
        %s315 = smul.addr %s314, 4
        %s316 = scalar_lea.vmem [#allocation4], %s315
        // Predicated region
        $region41: #{tpu_custom_call.1} parent=35 // pred_check
          %p317 = pneg %p115
        $region42: #{tpu_custom_call.1} parent=35 // pred_check_branch
          %319 = sbr.rel (%p317) target = $region44
        $region43: #{tpu_custom_call.1} parent=35 // pred_region
          %320 = dma.done %s313, 64
        $region44: #{tpu_custom_call.1} parent=35 // pred_fallthru
          _
        %p321 = scmp.lt.s32.totalorder %s28, 1
        %s322 = scalar_select %p321, %s28, 1
        %p323 = scmp.lt.s32.totalorder %s29, 1
        %s324 = scalar_select %p323, %s29, 1
        %s325 = smul.addr %s322, 2
        %s326 = sadd.s32 %s324, %s325
        %s327 = smul.addr %s326, 4
        %s328 = scalar_lea.vmem %s0, %s327
        %p329 = pneg %p59
        %p330 = pneg %p56
        %s331 = sand.u32 %s74, 1
        %s332 = scalar_lea.sflag [#allocation3], %s331
        %s333 = sand.u32 %s74, 1
        %s334 = smul.addr %s333, 4
        %s335 = scalar_lea.vmem [#allocation2], %s334
        %p336 = pneg %p87
        %p337 = pneg %p84
        %s338 = sand.u32 %s102, 1
        %s339 = scalar_lea.sflag [#allocation5], %s338
        %s340 = sand.u32 %s102, 1
        %s341 = smul.addr %s340, 4
        %s342 = scalar_lea.vmem [#allocation4], %s341
        %p343 = pneg %p115
        %p344 = pneg %p112
        %p345 = scmp.lt.s32.totalorder %s28, 1
        %s346 = scalar_select %p345, %s28, 1
        %s347 = smul.addr %s346, 8
        %s348 = scalar_lea.vmem %s3, %s347
        %p349 = pneg %p141
        %p350 = pneg %p138
        %p351 = pneg %p167
        %p352 = pneg %p164
        %p353 = scmp.lt.s32.totalorder %s28, 1
        %s354 = scalar_select %p353, %s28, 1
        %s355 = scalar_lea.vmem %s4, %s354
        %p356 = pneg %p193
        %p357 = pneg %p190
        %p358 = scmp.lt.s32.totalorder %s28, 1
        %s359 = scalar_select %p358, %s28, 1
        %s360 = scalar_lea.vmem %s5, %s359
        %p361 = pneg %p219
        %p362 = pneg %p216
        %p363 = scmp.lt.s32.totalorder %s28, 1
        %s364 = scalar_select %p363, %s28, 1
        %s365 = scalar_lea.vmem %s6, %s364
        %p366 = scmp.lt.s32.totalorder %s28, 1
        %s367 = scalar_select %p366, %s28, 1
        %p368 = scmp.lt.s32.totalorder %s29, 1
        %s369 = scalar_select %p368, %s29, 1
        %s370 = smul.addr %s367, 2
        %s371 = sadd.s32 %s369, %s370
        %s372 = smul.addr %s371, 4
        %s373 = scalar_lea.vmem %s0, %s372
        %p374 = scmp.lt.s32.totalorder %s28, 1
        %s375 = scalar_select %p374, %s28, 1
        %s376 = smul.addr %s375, 8
        %s377 = scalar_lea.vmem %s3, %s376
        %p378 = scmp.lt.s32.totalorder %s28, 1
        %s379 = scalar_select %p378, %s28, 1
        %s380 = scalar_lea.vmem %s4, %s379
        %p381 = scmp.lt.s32.totalorder %s28, 1
        %s382 = scalar_select %p381, %s28, 1
        %s383 = scalar_lea.vmem %s5, %s382
        %p384 = scmp.lt.s32.totalorder %s28, 1
        %s385 = scalar_select %p384, %s28, 1
        %s386 = scalar_lea.vmem %s6, %s385
        %p387 = scmp.eq.s32.totalorder %s29, 0
        // Predicated region
        $region45: #{tpu_custom_call.1} parent=35 // pred_check
          %p388 = pneg %p387
        $region46: #{tpu_custom_call.1} parent=35 // pred_check_branch
          %390 = sbr.rel (%p388) target = $region48
        $region47: #{tpu_custom_call.1} parent=35 // pred_region
          %vm391 = vcmask 0
          %392 = vst.msk [vmem:[%s380] sm:$0x1] %vm391, 0.0
          %393 = vst.msk [vmem:[%s383] sm:$0x1] %vm391, 0.0
          %394 = vst.msk [vmem:[%s386] sm:$0x1] %vm391, 0.0
        $region48: #{tpu_custom_call.1} parent=35 // pred_fallthru
          _
        %v395 = vld [vmem:[%s373] sm:$0xf]
        %v396 = vld [vmem:[%s307] sm:$0xf]
        %v397 = vld [vmem:[%s316] sm:$0xf]
        %v398 = vld [vmem:[%s377] sm:$0xff]
        %v399 = vmul.f32 %v395, 0.5
        %v401 = vrot.slane %v399, 2
        %v403 = vsub.f32 %v395, %v401
        %v404 = vadd.f32 %v395, %v401
        %v405 = vmul.f32 %v398, 0.5
        %407 = vrot.lane.b32.xlu0 %v405, 126
        %v408 = vpop.permute.xlu0 %407
        %v410 = vsub.f32 %v398, %v408
        %v411 = vadd.f32 %v398, %v408
        %v412 = vlaneseq
        %v413 = vshrl.u32 %v412, 7
        %v414 = vsub.s32 0, %v413
        %v415 = vrot.slane %v404, %v414
        %417 = vset.pattern.permute.xlu0 0
        %418 = vperm.xlu0 %417, %v411
        %v419 = vpop.permute.xlu0 %418
        %v421 = vmin.f32 %v415, %v419
        %v422 = vlaneseq
        %v423 = vshrl.u32 %v422, 7
        %v424 = vsub.s32 0, %v423
        %v425 = vrot.slane %v403, %v424
        %427 = vset.pattern.permute.xlu0 0
        %428 = vperm.xlu0 %427, %v410
        %v429 = vpop.permute.xlu0 %428
        %v431 = vmax.f32 %v425, %v429
        %v432 = vsub.f32 %v421, %v431
        %v433 = vmax.f32 %v432, 0.0
        %v434 = vlaneseq
        %v435 = vshrl.u32 %v434, 7
        %v436 = vsub.s32 1, %v435
        %v437 = vrot.slane %v404, %v436
        %438 = vset.pattern.permute.xlu0 1
        %439 = vperm.xlu0 %438, %v411
        %v440 = vpop.permute.xlu0 %439
        %v442 = vmin.f32 %v437, %v440
        %v443 = vlaneseq
        %v444 = vshrl.u32 %v443, 7
        %v445 = vsub.s32 1, %v444
        %v446 = vrot.slane %v403, %v445
        %447 = vset.pattern.permute.xlu0 1
        %448 = vperm.xlu0 %447, %v410
        %v449 = vpop.permute.xlu0 %448
        %v451 = vmax.f32 %v446, %v449
        %v452 = vsub.f32 %v442, %v451
        %v453 = vmax.f32 %v452, 0.0
        %v454 = vmul.f32 %v433, %v453
        %v456 = vrot.slane %v395, 1
        %v458 = vmul.f32 %v395, %v456
        %460 = vrot.lane.b32.xlu0 %v398, 127
        %v461 = vpop.permute.xlu0 %460
        %v463 = vmul.f32 %v398, %v461
        %v464 = vlaneseq
        %v465 = vshrl.u32 %v464, 7
        %v466 = vsub.s32 2, %v465
        %v467 = vrot.slane %v458, %v466
        %469 = vset.pattern.permute.xlu0 2
        %470 = vperm.xlu0 %469, %v463
        %v471 = vpop.permute.xlu0 %470
        %v473 = vadd.f32 %v467, %v471
        %v474 = vsub.f32 %v473, %v454
        %v475 = vadd.f32 %v474, 1e-08
        %v476 = vrcp.pop %v475
        %v477 = vmul.f32 %v454, %v476
        %v478 = vrot.slane %v477, 4
        %v479 = vmax.f32 %v477, %v478
        %v480 = vrot.slane %v479, 2
        %v481 = vmax.f32 %v479, %v480
        %v482 = vrot.slane %v481, 1
        %v483 = vmax.f32 %v481, %v482
        %v484 = vlaneseq
        %v485 = vshrl.u32 %v484, 7
        %vm486 = vcmp.eq.f32.partialorder %v477, %v483
        %v487 = vsel %vm486, %v485, 8
        %v488 = vrot.slane %v487, 4
        %vm489 = vcmp.lt.s32.totalorder %v487, %v488
        %v490 = vsel %vm489, %v487, %v488
        %v491 = vrot.slane %v490, 2
        %vm492 = vcmp.lt.s32.totalorder %v490, %v491
        %v493 = vsel %vm492, %v490, %v491
        %v494 = vrot.slane %v493, 1
        %vm495 = vcmp.lt.s32.totalorder %v493, %v494
        %v496 = vsel %vm495, %v493, %v494
        %vm497 = vcmp.gt.f32.partialorder %v483, 0.5
        %vm498 = vcmp.lt.f32.partialorder %v483, 0.4
        %v499 = vsel %vm498, 4294967295, 4294967294
        %v500 = vsel %vm497, %v496, %v499
        %vm501 = vcmp.ge.s32.totalorder %v500, 0
        %v502 = vsel %vm501, 1, 0
        %v503 = vcvt.s32.f32 %v502
        %vm504 = vcmp.ge.s32.totalorder %v500, 4294967295
        %v505 = vsel %vm504, 1, 0
        %v506 = vcvt.s32.f32 %v505
        %vm507 = vcmp.eq.s32.totalorder %v485, %v500
        %vm508 = vcmp.eq.s32.totalorder %v502, 1
        %vm509 = vmand %vm507, %vm508
        %v510 = vsel %vm509, 1.0, 0.0
        %511 = vset.pattern.permute.xlu0 0
        %512 = vperm.xlu0 %511, %v398
        %v513 = vpop.permute.xlu0 %512
        %v515 = vmul.f32 %v510, %v513
        %v516 = vrot.slane %v515, 4
        %v517 = vadd.f32 %v515, %v516
        %v518 = vrot.slane %v517, 2
        %v519 = vadd.f32 %v517, %v518
        %v520 = vrot.slane %v519, 1
        %v521 = vadd.f32 %v519, %v520
        %522 = vset.pattern.permute.xlu0 1
        %523 = vperm.xlu0 %522, %v398
        %v524 = vpop.permute.xlu0 %523
        %v526 = vmul.f32 %v510, %v524
        %v527 = vrot.slane %v526, 4
        %v528 = vadd.f32 %v526, %v527
        %v529 = vrot.slane %v528, 2
        %v530 = vadd.f32 %v528, %v529
        %v531 = vrot.slane %v530, 1
        %v532 = vadd.f32 %v530, %v531
        %533 = vset.pattern.permute.xlu0 2
        %534 = vperm.xlu0 %533, %v398
        %v535 = vpop.permute.xlu0 %534
        %v537 = vmul.f32 %v510, %v535
        %v538 = vrot.slane %v537, 4
        %v539 = vadd.f32 %v537, %v538
        %v540 = vrot.slane %v539, 2
        %v541 = vadd.f32 %v539, %v540
        %v542 = vrot.slane %v541, 1
        %v543 = vadd.f32 %v541, %v542
        %544 = vset.pattern.permute.xlu0 3
        %545 = vperm.xlu0 %544, %v398
        %v546 = vpop.permute.xlu0 %545
        %v548 = vmul.f32 %v510, %v546
        %v549 = vrot.slane %v548, 4
        %v550 = vadd.f32 %v548, %v549
        %v551 = vrot.slane %v550, 2
        %v552 = vadd.f32 %v550, %v551
        %v553 = vrot.slane %v552, 1
        %v554 = vadd.f32 %v552, %v553
        %555 = vset.pattern.permute.xlu0 4
        %556 = vperm.xlu0 %555, %v398
        %v557 = vpop.permute.xlu0 %556
        %v559 = vmul.f32 %v510, %v557
        %v560 = vrot.slane %v559, 4
        %v561 = vadd.f32 %v559, %v560
        %v562 = vrot.slane %v561, 2
        %v563 = vadd.f32 %v561, %v562
        %v564 = vrot.slane %v563, 1
        %v565 = vadd.f32 %v563, %v564
        %v566 = vrcp.pop %v395
        %v567 = vmul.f32 1.0, %v566
        %v568 = vsub.f32 %v521, %v395
        %v570 = vrot.slane %v567, 2
        %v572 = vmul.f32 %v568, %v570
        %v573 = vmul.f32 %v572, 10.0
        %v574 = vsub.f32 %v532, %v395
        %v575 = vmul.f32 %v574, %v570
        %v576 = vmul.f32 %v575, 10.0
        %v577 = vmul.f32 %v543, %v567
        %v578 = vadd.f32 %v577, 1e-08
        %v579 = vlog2.pop %v578
        %v580 = vmul.f32 %v579, 0.6931472
        %v581 = vmul.f32 %v580, 5.0
        %v582 = vmul.f32 %v554, %v567
        %v583 = vadd.f32 %v582, 1e-08
        %v584 = vlog2.pop %v583
        %v585 = vmul.f32 %v584, 0.6931472
        %v586 = vmul.f32 %v585, 5.0
        %v587 = vsub.f32 %v397, %v573
        %v588 = vand.u32 2147483647, %v587
        %vm589 = vcmp.lt.f32.partialorder %v588, 0.11111111
        %v590 = vmul.f32 %v588, 4.5
        %v591 = vmul.f32 %v590, %v588
        %v592 = vsub.f32 %v588, 0.055555556
        %v593 = vsel %vm589, %v591, %v592
        %v594 = vsub.f32 %v397, %v576
        %v595 = vand.u32 2147483647, %v594
        %vm596 = vcmp.lt.f32.partialorder %v595, 0.11111111
        %v597 = vmul.f32 %v595, 4.5
        %v598 = vmul.f32 %v597, %v595
        %v599 = vsub.f32 %v595, 0.055555556
        %v600 = vsel %vm596, %v598, %v599
        %v602 = vrot.slane %v600, 1
        %v604 = vadd.f32 %v593, %v602
        %v605 = vsub.f32 %v397, %v581
        %v606 = vand.u32 2147483647, %v605
        %vm607 = vcmp.lt.f32.partialorder %v606, 0.11111111
        %v608 = vmul.f32 %v606, 4.5
        %v609 = vmul.f32 %v608, %v606
        %v610 = vsub.f32 %v606, 0.055555556
        %v611 = vsel %vm607, %v609, %v610
        %v613 = vrot.slane %v611, 2
        %v615 = vadd.f32 %v604, %v613
        %v616 = vsub.f32 %v397, %v586
        %v617 = vand.u32 2147483647, %v616
        %vm618 = vcmp.lt.f32.partialorder %v617, 0.11111111
        %v619 = vmul.f32 %v617, 4.5
        %v620 = vmul.f32 %v619, %v617
        %v621 = vsub.f32 %v617, 0.055555556
        %v622 = vsel %vm618, %v620, %v621
        %v624 = vrot.slane %v622, 3
        %v626 = vadd.f32 %v615, %v624
        %v627 = vmul.f32 %v626, %v503
        %v628 = vadd.f32 %v396, 1.0
        %v629 = vcvt.s32.f32 %v485
        %v630 = vsub.f32 %v565, 1.0
        %vm631 = vcmp.eq.f32.partialorder %v629, %v630
        %v632 = vsel %vm631, 1.0, 0.0
        %v633 = vand.u32 2147483647, %v628
        %v634 = vsub.f32 0.0, %v633
        %v635 = vmul.f32 %v634, 1.442695
        %v636 = vpow.pop %v635
        %v637 = vadd.f32 %v636, 1.0
        %v638 = vrcp.pop %v637
        %v639 = vmul.f32 1.0, %v638
        %vm640 = vcmp.ge.f32.partialorder %v628, 0.0
        %v641 = vmul.f32 %v636, %v639
        %v642 = vsel %vm640, %v639, %v641
        %v643 = vsub.f32 1.0, %v642
        %v644 = vmul.f32 %v632, %v643
        %v645 = vsub.f32 1.0, %v632
        %v646 = vmul.f32 %v645, %v642
        %v647 = vadd.f32 %v644, %v646
        %v648 = vmul.f32 %v645, 0.25
        %v649 = vmul.f32 %v632, 0.75
        %v650 = vadd.f32 %v648, %v649
        %v651 = vmul.f32 %v647, %v647
        %v652 = vmul.f32 %v651, %v650
        %v653 = vmax.f32 %v628, 0.0
        %v654 = vmul.f32 %v628, %v632
        %v655 = vsub.f32 %v653, %v654
        %v656 = vlog2.pop %v637
        %v657 = vmul.f32 %v656, 0.6931472
        %v658 = vadd.f32 %v655, %v657
        %v659 = vmul.f32 %v652, %v658
        %v660 = vmul.f32 %v659, %v506
        %v661 = vld [vmem:[%s380] sm:$0x1]
        %vm662 = vcmask 1040384
        %v663 = vsel %vm662, %v627, 0.0
        %664 = vadd.xlane.f32.xlu0 %v663
        %v665 = vpop.xlane.xlu0 %664
        %v666 = vrot.slane %v665, 4
        %v667 = vadd.f32 %v665, %v666
        %v668 = vrot.slane %v667, 2
        %v669 = vadd.f32 %v667, %v668
        %v670 = vrot.slane %v669, 1
        %v671 = vadd.f32 %v669, %v670
        %s672 = vtos %v671
        %v673 = vstv %s672
        %v674 = vadd.f32 %v661, %v673
        %vm675 = vcmask 0
        %676 = vst.msk [vmem:[%s380] sm:$0x1] %vm675, %v674
        %v677 = vld [vmem:[%s383] sm:$0x1]
        %vm678 = vcmask 1043456
        %v679 = vsel %vm678, %v660, 0.0
        %680 = vadd.xlane.f32.xlu0 %v679
        %v681 = vpop.xlane.xlu0 %680
        %v682 = vrot.slane %v681, 4
        %v683 = vadd.f32 %v681, %v682
        %v684 = vrot.slane %v683, 2
        %v685 = vadd.f32 %v683, %v684
        %v686 = vrot.slane %v685, 1
        %v687 = vadd.f32 %v685, %v686
        %s688 = vtos %v687
        %v689 = vstv %s688
        %v690 = vadd.f32 %v677, %v689
        %691 = vst.msk [vmem:[%s383] sm:$0x1] %vm675, %v690
        %v692 = vld [vmem:[%s386] sm:$0x1]
        %v693 = vsel %vm662, %v503, 0.0
        %694 = vadd.xlane.f32.xlu0 %v693
        %v695 = vpop.xlane.xlu0 %694
        %v696 = vrot.slane %v695, 4
        %v697 = vadd.f32 %v695, %v696
        %v698 = vrot.slane %v697, 2
        %v699 = vadd.f32 %v697, %v698
        %v700 = vrot.slane %v699, 1
        %v701 = vadd.f32 %v699, %v700
        %s702 = vtos %v701
        %v703 = vstv %s702
        %v704 = vadd.f32 %v692, %v703
        %705 = vst.msk [vmem:[%s386] sm:$0x1] %vm675, %v704
        %p706 = scmp.lt.s32.totalorder %s28, 1
        %s707 = scalar_select %p706, %s28, 1
        %s708 = scalar_lea.vmem %s4, %s707
        %p709 = scmp.lt.s32.totalorder %s28, 1
        %s710 = scalar_select %p709, %s28, 1
        %s711 = scalar_lea.vmem %s5, %s710
        %p712 = scmp.lt.s32.totalorder %s28, 1
        %s713 = scalar_select %p712, %s28, 1
        %s714 = scalar_lea.vmem %s6, %s713
        // Predicated region
        $region49: #{tpu_custom_call.1} parent=35 // pred_check
          %p715 = pneg %p164
        $region50: #{tpu_custom_call.1} parent=35 // pred_check_branch
          %717 = sbr.rel (%p715) target = $region52
        $region51: #{tpu_custom_call.1} parent=35 // pred_region
          _
        $region52: #{tpu_custom_call.1} parent=35 // pred_fallthru
          _
        // Predicated region
        $region53: #{tpu_custom_call.1} parent=35 // pred_check
          %p718 = pneg %p190
        $region54: #{tpu_custom_call.1} parent=35 // pred_check_branch
          %720 = sbr.rel (%p718) target = $region56
        $region55: #{tpu_custom_call.1} parent=35 // pred_region
          _
        $region56: #{tpu_custom_call.1} parent=35 // pred_fallthru
          _
        // Predicated region
        $region57: #{tpu_custom_call.1} parent=35 // pred_check
          %p721 = pneg %p216
        $region58: #{tpu_custom_call.1} parent=35 // pred_check_branch
          %723 = sbr.rel (%p721) target = $region60
        $region59: #{tpu_custom_call.1} parent=35 // pred_region
          _
        $region60: #{tpu_custom_call.1} parent=35 // pred_fallthru
          _
      $region36: #{tpu_custom_call.1} parent=5 // pred_fallthru
        _
      %p724 = scmp.le.s32.totalorder 2, %s19
      // Predicated region
      $region61: #{tpu_custom_call.1} parent=5 // pred_check
        %p725 = pneg %p724
      $region62: #{tpu_custom_call.1} parent=5 // pred_check_branch
        %727 = sbr.rel (%p725) target = $region64
      $region63: #{tpu_custom_call.1} parent=5 // pred_region
        %s728 = ssub.s32 %s19, 2
        // Predicated region
        $region65: #{tpu_custom_call.1} parent=63 // pred_check
          %p729 = pneg %p170
        $region66: #{tpu_custom_call.1} parent=63 // pred_check_branch
          %731 = sbr.rel (%p729) target = $region68
        $region67: #{tpu_custom_call.1} parent=63 // pred_region
          %p732 = scmp.lt.s32.totalorder %s30, 1
          %s733 = scalar_select %p732, %s30, 1
          %s734 = scalar_lea.vmem %s4, %s733
        $region68: #{tpu_custom_call.1} parent=63 // pred_fallthru
          _
        // Predicated region
        $region69: #{tpu_custom_call.1} parent=63 // pred_check
          %p735 = pneg %p196
        $region70: #{tpu_custom_call.1} parent=63 // pred_check_branch
          %737 = sbr.rel (%p735) target = $region72
        $region71: #{tpu_custom_call.1} parent=63 // pred_region
          %p738 = scmp.lt.s32.totalorder %s30, 1
          %s739 = scalar_select %p738, %s30, 1
          %s740 = scalar_lea.vmem %s5, %s739
        $region72: #{tpu_custom_call.1} parent=63 // pred_fallthru
          _
        // Predicated region
        $region73: #{tpu_custom_call.1} parent=63 // pred_check
          %p741 = pneg %p222
        $region74: #{tpu_custom_call.1} parent=63 // pred_check_branch
          %743 = sbr.rel (%p741) target = $region76
        $region75: #{tpu_custom_call.1} parent=63 // pred_region
          %p744 = scmp.lt.s32.totalorder %s30, 1
          %s745 = scalar_select %p744, %s30, 1
          %s746 = scalar_lea.vmem %s6, %s745
        $region76: #{tpu_custom_call.1} parent=63 // pred_fallthru
          _
      $region64: #{tpu_custom_call.1} parent=5 // pred_fallthru
        _
    $region6: #{tpu_custom_call.1} parent=1 // loop_footer
      %s23 = sadd.s32 1, %s19
    $region7: #{tpu_custom_call.1} parent=1 // loop_footer_branch
      %18 = sbr.rel target = $region3
    $region8: #{tpu_custom_call.1} parent=1 // loop_exit
      _
    %747 = vsyncpa [#allocation3], 1
    %s748 = scalar_lea.sflag [#allocation3], 1
    %749 = vsyncpa %s748, 1
    %750 = vsyncpa [#allocation5], 1
    %s751 = scalar_lea.sflag [#allocation5], 1
    %752 = vsyncpa %s751, 1

</llo_original>
